<compile_context>
chip_gen: v5e
topology: v5e:2x2
jax: 0.10.0
libtpu: 0.0.40
codegen_flags: <defaults>
</compile_context>

<pallas_src>
import functools
import math

import jax
import jax.numpy as jnp
import numpy as np
from jax.experimental import pallas as pl
from jax.experimental.pallas import tpu as pltpu

EPS = 1e-5
KH = KW = 3  # filter_size=3, stride=1, padding=1


# ----------------------------------------------------------------------------
# Kernel
# ----------------------------------------------------------------------------
def b_block_kernel(x_ref,                 # (N*H, L) input slab (padded channels are 0)
                   b1_ref, b2_ref,        # (3*L, L) stacked banded conv weights
                   g1_ref, be1_ref,       # (1, L) BN1 gamma/beta (widened)
                   g2_ref, be2_ref,       # (1, L) BN2 gamma/beta (widened)
                   out_ref,               # (N*H, L)
                   *, H, Cp, L, inv_count):
    x = x_ref[...]
    NH = x.shape[0]

    # ---- hoisted structural constants (built once, reused by both convs/BNs) ----
    # image-row boundary masks for the kh=0 / kh=2 sublane rolls
    h_idx = jax.lax.broadcasted_iota(jnp.int32, (NH, 1), 0) % H
    not_top = h_idx != 0           # rows that have a valid row above (h-1)
    not_bot = h_idx != (H - 1)     # rows that have a valid row below (h+1)

    # Gsum[(w1,c1),(w2,c2)] = delta(c1,c2): sums BN stats over w and broadcasts
    # the per-channel result back to the wide (w,c) lane layout.
    li = jax.lax.broadcasted_iota(jnp.int32, (L, L), 0)
    lj = jax.lax.broadcasted_iota(jnp.int32, (L, L), 1)
    gsum = ((li % Cp) == (lj % Cp)).astype(jnp.float32)

    def conv3x3(inp, band_ref):
        # sublane rolls on the XLU; masks zero the rows wrapped across image
        # (and batch) boundaries -> exact zero padding in h.
        up = jnp.where(not_top, pltpu.roll(inp, shift=1, axis=0), 0.0)       # row i <- inp[i-1]
        dn = jnp.where(not_bot, pltpu.roll(inp, shift=NH - 1, axis=0), 0.0)  # row i <- inp[i+1]
        # single K=3L matmul: kw taps + width padding live in the band matrix
        stacked = jnp.concatenate([up, inp, dn], axis=1)                     # (NH, 3L)
        return jnp.dot(stacked, band_ref[...], preferred_element_type=jnp.float32)

    def bn_scale_shift(acc, gamma_w, beta_w):
        # single-pass batch stats: per-(w,c) column sums, then one small matmul
        # reduces over w and broadcasts the per-channel result to the wide layout.
        col_sum = jnp.sum(acc, axis=0, keepdims=True)            # (1, L)
        col_sq = jnp.sum(acc * acc, axis=0, keepdims=True)       # (1, L)
        stats = jnp.concatenate([col_sum, col_sq], axis=0)       # (2, L)
        stats_w = jnp.dot(stats, gsum,
                          preferred_element_type=jnp.float32) * inv_count
        mean_w = stats_w[0:1, :]
        var_w = stats_w[1:2, :] - mean_w * mean_w                # biased (training-mode BN)
        s = gamma_w * jax.lax.rsqrt(var_w + EPS)
        t = beta_w - mean_w * s
        return s, t

    # conv1 + BN1 + ReLU   (conv bias omitted: cancelled by train-mode BN mean subtraction)
    acc1 = conv3x3(x, b1_ref)
    s1, t1 = bn_scale_shift(acc1, g1_ref[...], be1_ref[...])
    h1 = jnp.maximum(acc1 * s1 + t1, 0.0)

    # conv2 + BN2
    acc2 = conv3x3(h1, b2_ref)
    s2, t2 = bn_scale_shift(acc2, g2_ref[...], be2_ref[...])

    # identity residual (downsample_net is None)
    out_ref[...] = x + (acc2 * s2 + t2)


# ----------------------------------------------------------------------------
# Wrapper: layout transforms + stacked banded weight construction
# ----------------------------------------------------------------------------
def _band_weights_stacked(w_hwio, W, Cp):
    """Stacked banded matrix of shape (KH * W*Cp, W*Cp):
       row block kh holds B[kh][(w_in,ci),(w_out,co)] =
       w_hwio[kh, w_in-w_out+1, ci, co] if |w_in-w_out| <= 1 else 0."""
    kh_sz, kw_sz, cin, cout = w_hwio.shape
    wp = jnp.zeros((kh_sz, kw_sz, Cp, Cp), jnp.float32).at[:, :, :cin, :cout].set(w_hwio)
    wi = np.arange(W)[:, None]
    wo = np.arange(W)[None, :]
    M = np.stack([(wi - wo) == (k - 1) for k in range(kw_sz)], axis=0).astype(np.float32)
    Mj = jnp.asarray(M)                                          # (kw, W, W)
    # exact (at most one nonzero term per entry): B[kh, wi, ci, wo, co]
    # TODO(synk): this dense intermediate only works at toy W*Cp; production
    # shapes should switch to channel-space 9-tap matmuls instead of bands.
    B = (Mj[None, :, :, None, :, None] * wp[:, :, None, :, None, :]).sum(axis=1)
    return B.reshape(kh_sz * W * Cp, W * Cp)                     # (3L, L)


def _widen_param(v, W, Cp, Cout):
    vp = jnp.zeros((1, Cp), jnp.float32).at[0, :Cout].set(v.reshape(-1))
    return jnp.tile(vp, (1, W))                                  # (1, W*Cp)


def b_block_forward(x_nchw, params):
    """x_nchw: (N, Cin, H, W) float32. Returns (N, Cout, H, W)."""
    w1, b1, g1, be1, w2, b2, g2, be2 = params
    del b1, b2  # conv biases are unobservable through training-mode BatchNorm
    N, Cin, H, W = x_nchw.shape
    Cout = w1.shape[-1]
    assert Cin == Cout, "identity residual (downsample_net=None) requires inlayer == outlayer"

    # pad channels so the lane dim W*Cp is a multiple of 128 (lane-dense layout)
    step = 128 // math.gcd(W, 128)
    Cp = step * ((max(Cin, Cout) + step - 1) // step)
    L = W * Cp
    NH = N * H

    x_nhwc = jnp.transpose(x_nchw, (0, 2, 3, 1))
    x_slab = jnp.pad(x_nhwc, ((0, 0), (0, 0), (0, 0), (0, Cp - Cin))).reshape(NH, L)

    B1 = _band_weights_stacked(w1, W, Cp)                        # (3L, L)
    B2 = _band_weights_stacked(w2, W, Cp)                        # (3L, L)

    g1w, be1w = _widen_param(g1, W, Cp, Cout), _widen_param(be1, W, Cp, Cout)
    g2w, be2w = _widen_param(g2, W, Cp, Cout), _widen_param(be2, W, Cp, Cout)

    kernel = functools.partial(b_block_kernel, H=H, Cp=Cp, L=L,
                               inv_count=1.0 / float(N * H * W))
    vmem = pl.BlockSpec(memory_space=pltpu.MemorySpace.VMEM)
    out_slab = pl.pallas_call(
        kernel,
        out_shape=jax.ShapeDtypeStruct((NH, L), jnp.float32),
        in_specs=[vmem] * 7,
        out_specs=vmem,
    )(x_slab, B1, B2, g1w, be1w, g2w, be2w)

    out = out_slab.reshape(N, H, W, Cp)[..., :Cout]
    return jnp.transpose(out, (0, 3, 1, 2))


# ----------------------------------------------------------------------------
# Pure-JAX reference (identical semantics) for validation
# ----------------------------------------------------------------------------
def b_block_reference(x_nchw, params):
    w1, b1, g1, be1, w2, b2, g2, be2 = params
    x = jnp.transpose(x_nchw, (0, 2, 3, 1))

    def conv(h, w, b):
        y = jax.lax.conv_general_dilated(
            h, w, window_strides=(1, 1), padding="SAME",
            dimension_numbers=("NHWC", "HWIO", "NHWC"),
            precision=jax.lax.Precision.HIGHEST)
        return y + b.reshape(1, 1, 1, -1)

    def bn(h, g, be):
        mu = jnp.mean(h, axis=(0, 1, 2), keepdims=True)
        var = jnp.mean((h - mu) ** 2, axis=(0, 1, 2), keepdims=True)
        return (h - mu) * jax.lax.rsqrt(var + EPS) * g.reshape(1, 1, 1, -1) \
            + be.reshape(1, 1, 1, -1)

    out = jnp.maximum(bn(conv(x, w1, b1), g1, be1), 0.0)
    out = bn(conv(out, w2, b2), g2, be2)
    out = x + out
    return jnp.transpose(out, (0, 3, 1, 2))


def init_params(key, cin, cout):
    ks = jax.random.split(key, 8)
    w1 = 0.1 * jax.random.normal(ks[0], (KH, KW, cin, cout), jnp.float32)   # HWIO
    b1 = 0.1 * jax.random.normal(ks[1], (1, cout), jnp.float32)
    g1 = 1.0 + 0.1 * jax.random.normal(ks[2], (1, cout), jnp.float32)
    be1 = 0.1 * jax.random.normal(ks[3], (1, cout), jnp.float32)
    w2 = 0.1 * jax.random.normal(ks[4], (KH, KW, cout, cout), jnp.float32)
    b2 = 0.1 * jax.random.normal(ks[5], (1, cout), jnp.float32)
    g2 = 1.0 + 0.1 * jax.random.normal(ks[6], (1, cout), jnp.float32)
    be2 = 0.1 * jax.random.normal(ks[7], (1, cout), jnp.float32)
    return (w1, b1, g1, be1, w2, b2, g2, be2)


if __name__ == "__main__":
    key = jax.random.PRNGKey(0)
    kx, kp = jax.random.split(key)

    N, C, Hs, Ws = 2, 4, 16, 16          # inlayer == outlayer == 4 (identity residual)
    x = jax.random.normal(kx, (N, C, Hs, Ws), jnp.float32)
    params = init_params(kp, C, C)

    out = jax.block_until_ready(b_block_forward(x, params))
    ref = jax.block_until_ready(b_block_reference(x, params))

    np.testing.assert_allclose(np.asarray(out), np.asarray(ref),
                               rtol=2e-4, atol=2e-4)
    assert out.shape == (N, C, Hs, Ws) and out.dtype == jnp.float32
    print("KERNEL_OK")
</pallas_src>

<mosaic_0001>
module attributes {stable_mosaic.version = 11 : i64} {
  func.func @b_block_kernel(%arg0: memref<32x128xf32, #tpu.memory_space<vmem>>, %arg1: memref<384x128xf32, #tpu.memory_space<vmem>>, %arg2: memref<384x128xf32, #tpu.memory_space<vmem>>, %arg3: memref<1x128xf32, #tpu.memory_space<vmem>>, %arg4: memref<1x128xf32, #tpu.memory_space<vmem>>, %arg5: memref<1x128xf32, #tpu.memory_space<vmem>>, %arg6: memref<1x128xf32, #tpu.memory_space<vmem>>, %arg7: memref<32x128xf32, #tpu.memory_space<vmem>>) attributes {dimension_semantics = [], scalar_prefetch = 0 : i64, scratch_operands = 0 : i64, tpu.core_type = #tpu.core_type<tc>} {
    %c0 = arith.constant 0 : index
    %c0_0 = arith.constant 0 : index
    %0 = vector.load %arg0[%c0, %c0_0] : memref<32x128xf32, #tpu.memory_space<vmem>>, vector<32x128xf32>
    %1 = tpu.iota {dimensions = array<i32: 0>} : vector<32x1xi32>
    %c16_i32 = arith.constant 16 : i32
    %c0_i32 = arith.constant 0 : i32
    %2 = arith.cmpi eq, %c16_i32, %c0_i32 : i32
    %c1_i32 = arith.constant 1 : i32
    %3 = arith.select %2, %c1_i32, %c16_i32 : i32
    %4 = vector.broadcast %3 : i32 to vector<32x1xi32>
    %5 = arith.remsi %1, %4 : vector<32x1xi32>
    %c0_i32_1 = arith.constant 0 : i32
    %6 = vector.broadcast %c0_i32_1 : i32 to vector<32x1xi32>
    %7 = arith.cmpi ne, %5, %6 : vector<32x1xi32>
    %c0_i32_2 = arith.constant 0 : i32
    %8 = vector.broadcast %c0_i32_2 : i32 to vector<32x1xi32>
    %9 = arith.cmpi slt, %5, %8 : vector<32x1xi32>
    %c0_i32_3 = arith.constant 0 : i32
    %10 = arith.cmpi slt, %3, %c0_i32_3 : i32
    %11 = vector.broadcast %10 : i1 to vector<32x1xi1>
    %12 = vector.broadcast %11 : vector<32x1xi1> to vector<32x1xi1>
    %13 = arith.xori %9, %12 : vector<32x1xi1>
    %14 = arith.andi %13, %7 : vector<32x1xi1>
    %15 = vector.broadcast %3 : i32 to vector<32x1xi32>
    %16 = arith.addi %5, %15 : vector<32x1xi32>
    %17 = arith.select %14, %16, %5 : vector<32x1xi1>, vector<32x1xi32>
    %c0_i32_4 = arith.constant 0 : i32
    %18 = vector.broadcast %c0_i32_4 : i32 to vector<32x1xi32>
    %19 = arith.cmpi ne, %17, %18 : vector<32x1xi32>
    %c15_i32 = arith.constant 15 : i32
    %20 = vector.broadcast %c15_i32 : i32 to vector<32x1xi32>
    %21 = arith.cmpi ne, %17, %20 : vector<32x1xi32>
    %22 = tpu.iota {dimensions = array<i32: 0>} : vector<128x128xi32>
    %23 = tpu.iota {dimensions = array<i32: 1>} : vector<128x128xi32>
    %c8_i32 = arith.constant 8 : i32
    %c0_i32_5 = arith.constant 0 : i32
    %24 = arith.cmpi eq, %c8_i32, %c0_i32_5 : i32
    %c1_i32_6 = arith.constant 1 : i32
    %25 = arith.select %24, %c1_i32_6, %c8_i32 : i32
    %26 = vector.broadcast %25 : i32 to vector<128x128xi32>
    %27 = arith.remsi %22, %26 : vector<128x128xi32>
    %c0_i32_7 = arith.constant 0 : i32
    %28 = vector.broadcast %c0_i32_7 : i32 to vector<128x128xi32>
    %29 = arith.cmpi ne, %27, %28 : vector<128x128xi32>
    %c0_i32_8 = arith.constant 0 : i32
    %30 = vector.broadcast %c0_i32_8 : i32 to vector<128x128xi32>
    %31 = arith.cmpi slt, %27, %30 : vector<128x128xi32>
    %c0_i32_9 = arith.constant 0 : i32
    %32 = arith.cmpi slt, %25, %c0_i32_9 : i32
    %33 = vector.broadcast %32 : i1 to vector<128x128xi1>
    %34 = vector.broadcast %33 : vector<128x128xi1> to vector<128x128xi1>
    %35 = arith.xori %31, %34 : vector<128x128xi1>
    %36 = arith.andi %35, %29 : vector<128x128xi1>
    %37 = vector.broadcast %25 : i32 to vector<128x128xi32>
    %38 = arith.addi %27, %37 : vector<128x128xi32>
    %39 = arith.select %36, %38, %27 : vector<128x128xi1>, vector<128x128xi32>
    %c8_i32_10 = arith.constant 8 : i32
    %c0_i32_11 = arith.constant 0 : i32
    %40 = arith.cmpi eq, %c8_i32_10, %c0_i32_11 : i32
    %c1_i32_12 = arith.constant 1 : i32
    %41 = arith.select %40, %c1_i32_12, %c8_i32_10 : i32
    %42 = vector.broadcast %41 : i32 to vector<128x128xi32>
    %43 = arith.remsi %23, %42 : vector<128x128xi32>
    %c0_i32_13 = arith.constant 0 : i32
    %44 = vector.broadcast %c0_i32_13 : i32 to vector<128x128xi32>
    %45 = arith.cmpi ne, %43, %44 : vector<128x128xi32>
    %c0_i32_14 = arith.constant 0 : i32
    %46 = vector.broadcast %c0_i32_14 : i32 to vector<128x128xi32>
    %47 = arith.cmpi slt, %43, %46 : vector<128x128xi32>
    %c0_i32_15 = arith.constant 0 : i32
    %48 = arith.cmpi slt, %41, %c0_i32_15 : i32
    %49 = vector.broadcast %48 : i1 to vector<128x128xi1>
    %50 = vector.broadcast %49 : vector<128x128xi1> to vector<128x128xi1>
    %51 = arith.xori %47, %50 : vector<128x128xi1>
    %52 = arith.andi %51, %45 : vector<128x128xi1>
    %53 = vector.broadcast %41 : i32 to vector<128x128xi32>
    %54 = arith.addi %43, %53 : vector<128x128xi32>
    %55 = arith.select %52, %54, %43 : vector<128x128xi1>, vector<128x128xi32>
    %56 = arith.cmpi eq, %39, %55 : vector<128x128xi32>
    %57 = arith.extui %56 : vector<128x128xi1> to vector<128x128xi32>
    %58 = arith.sitofp %57 : vector<128x128xi32> to vector<128x128xf32>
    %c1_i32_16 = arith.constant 1 : i32
    %59 = tpu.dynamic_rotate %0 by %c1_i32_16 dim 0 : vector<32x128xf32>, i32 -> vector<32x128xf32>
    %cst = arith.constant 0.000000e+00 : f32
    %60 = vector.shape_cast %19 : vector<32x1xi1> to vector<32x1xi1>
    %61 = vector.broadcast %60 : vector<32x1xi1> to vector<32x128xi1>
    %62 = vector.broadcast %cst : f32 to vector<32x128xf32>
    %63 = arith.select %61, %59, %62 : vector<32x128xi1>, vector<32x128xf32>
    %c31_i32 = arith.constant 31 : i32
    %64 = tpu.dynamic_rotate %0 by %c31_i32 dim 0 : vector<32x128xf32>, i32 -> vector<32x128xf32>
    %cst_17 = arith.constant 0.000000e+00 : f32
    %65 = vector.shape_cast %21 : vector<32x1xi1> to vector<32x1xi1>
    %66 = vector.broadcast %65 : vector<32x1xi1> to vector<32x128xi1>
    %67 = vector.broadcast %cst_17 : f32 to vector<32x128xf32>
    %68 = arith.select %66, %64, %67 : vector<32x128xi1>, vector<32x128xf32>
    %69 = tpu.concatenate %63, %0, %68 in 1 : vector<32x128xf32>, vector<32x128xf32>, vector<32x128xf32> -> vector<32x384xf32>
    %c0_18 = arith.constant 0 : index
    %c0_19 = arith.constant 0 : index
    %70 = vector.load %arg1[%c0_18, %c0_19] : memref<384x128xf32, #tpu.memory_space<vmem>>, vector<384x128xf32>
    %cst_20 = arith.constant dense<0.000000e+00> : vector<32x128xf32>
    %71 = tpu.matmul %69, %70, %cst_20 {dimension_numbers = #tpu.dot_dimension_numbers<[1], [0], [0], [1], [0, 0, 1, 1], [], []>} : vector<32x384xf32>, vector<384x128xf32>, vector<32x128xf32> -> vector<32x128xf32>
    %c0_21 = arith.constant 0 : index
    %c0_22 = arith.constant 0 : index
    %72 = vector.load %arg3[%c0_21, %c0_22] : memref<1x128xf32, #tpu.memory_space<vmem>>, vector<1x128xf32>
    %c0_23 = arith.constant 0 : index
    %c0_24 = arith.constant 0 : index
    %73 = vector.load %arg4[%c0_23, %c0_24] : memref<1x128xf32, #tpu.memory_space<vmem>>, vector<1x128xf32>
    %cst_25 = arith.constant dense<0.000000e+00> : vector<128xf32>
    %74 = vector.multi_reduction <add>, %71, %cst_25 [0] : vector<32x128xf32> to vector<128xf32>
    %75 = vector.shape_cast %74 : vector<128xf32> to vector<1x128xf32>
    %76 = arith.mulf %71, %71 : vector<32x128xf32>
    %cst_26 = arith.constant dense<0.000000e+00> : vector<128xf32>
    %77 = vector.multi_reduction <add>, %76, %cst_26 [0] : vector<32x128xf32> to vector<128xf32>
    %78 = vector.shape_cast %77 : vector<128xf32> to vector<1x128xf32>
    %79 = tpu.concatenate %75, %78 in 0 : vector<1x128xf32>, vector<1x128xf32> -> vector<2x128xf32>
    %cst_27 = arith.constant dense<0.000000e+00> : vector<2x128xf32>
    %80 = tpu.matmul %79, %58, %cst_27 {dimension_numbers = #tpu.dot_dimension_numbers<[1], [0], [0], [1], [0, 0, 1, 1], [], []>} : vector<2x128xf32>, vector<128x128xf32>, vector<2x128xf32> -> vector<2x128xf32>
    %cst_28 = arith.constant 0.001953125 : f32
    %81 = vector.broadcast %cst_28 : f32 to vector<2x128xf32>
    %82 = arith.mulf %80, %81 : vector<2x128xf32>
    %83 = vector.extract_strided_slice %82 {offsets = [0, 0], sizes = [1, 128], strides = [1, 1]} : vector<2x128xf32> to vector<1x128xf32>
    %84 = vector.extract_strided_slice %82 {offsets = [1, 0], sizes = [1, 128], strides = [1, 1]} : vector<2x128xf32> to vector<1x128xf32>
    %85 = arith.mulf %83, %83 : vector<1x128xf32>
    %86 = arith.subf %84, %85 : vector<1x128xf32>
    %cst_29 = arith.constant 9.99999974E-6 : f32
    %87 = vector.broadcast %cst_29 : f32 to vector<1x128xf32>
    %88 = arith.addf %86, %87 : vector<1x128xf32>
    %89 = math.rsqrt %88 : vector<1x128xf32>
    %90 = arith.mulf %72, %89 : vector<1x128xf32>
    %91 = arith.mulf %83, %90 : vector<1x128xf32>
    %92 = arith.subf %73, %91 : vector<1x128xf32>
    %93 = vector.broadcast %90 : vector<1x128xf32> to vector<32x128xf32>
    %94 = arith.mulf %71, %93 : vector<32x128xf32>
    %95 = vector.broadcast %92 : vector<1x128xf32> to vector<32x128xf32>
    %96 = arith.addf %94, %95 : vector<32x128xf32>
    %cst_30 = arith.constant 0.000000e+00 : f32
    %97 = vector.broadcast %cst_30 : f32 to vector<32x128xf32>
    %98 = arith.maximumf %96, %97 : vector<32x128xf32>
    %c1_i32_31 = arith.constant 1 : i32
    %99 = tpu.dynamic_rotate %98 by %c1_i32_31 dim 0 : vector<32x128xf32>, i32 -> vector<32x128xf32>
    %cst_32 = arith.constant 0.000000e+00 : f32
    %100 = vector.shape_cast %19 : vector<32x1xi1> to vector<32x1xi1>
    %101 = vector.broadcast %100 : vector<32x1xi1> to vector<32x128xi1>
    %102 = vector.broadcast %cst_32 : f32 to vector<32x128xf32>
    %103 = arith.select %101, %99, %102 : vector<32x128xi1>, vector<32x128xf32>
    %c31_i32_33 = arith.constant 31 : i32
    %104 = tpu.dynamic_rotate %98 by %c31_i32_33 dim 0 : vector<32x128xf32>, i32 -> vector<32x128xf32>
    %cst_34 = arith.constant 0.000000e+00 : f32
    %105 = vector.shape_cast %21 : vector<32x1xi1> to vector<32x1xi1>
    %106 = vector.broadcast %105 : vector<32x1xi1> to vector<32x128xi1>
    %107 = vector.broadcast %cst_34 : f32 to vector<32x128xf32>
    %108 = arith.select %106, %104, %107 : vector<32x128xi1>, vector<32x128xf32>
    %109 = tpu.concatenate %103, %98, %108 in 1 : vector<32x128xf32>, vector<32x128xf32>, vector<32x128xf32> -> vector<32x384xf32>
    %c0_35 = arith.constant 0 : index
    %c0_36 = arith.constant 0 : index
    %110 = vector.load %arg2[%c0_35, %c0_36] : memref<384x128xf32, #tpu.memory_space<vmem>>, vector<384x128xf32>
    %cst_37 = arith.constant dense<0.000000e+00> : vector<32x128xf32>
    %111 = tpu.matmul %109, %110, %cst_37 {dimension_numbers = #tpu.dot_dimension_numbers<[1], [0], [0], [1], [0, 0, 1, 1], [], []>} : vector<32x384xf32>, vector<384x128xf32>, vector<32x128xf32> -> vector<32x128xf32>
    %c0_38 = arith.constant 0 : index
    %c0_39 = arith.constant 0 : index
    %112 = vector.load %arg5[%c0_38, %c0_39] : memref<1x128xf32, #tpu.memory_space<vmem>>, vector<1x128xf32>
    %c0_40 = arith.constant 0 : index
    %c0_41 = arith.constant 0 : index
    %113 = vector.load %arg6[%c0_40, %c0_41] : memref<1x128xf32, #tpu.memory_space<vmem>>, vector<1x128xf32>
    %cst_42 = arith.constant dense<0.000000e+00> : vector<128xf32>
    %114 = vector.multi_reduction <add>, %111, %cst_42 [0] : vector<32x128xf32> to vector<128xf32>
    %115 = vector.shape_cast %114 : vector<128xf32> to vector<1x128xf32>
    %116 = arith.mulf %111, %111 : vector<32x128xf32>
    %cst_43 = arith.constant dense<0.000000e+00> : vector<128xf32>
    %117 = vector.multi_reduction <add>, %116, %cst_43 [0] : vector<32x128xf32> to vector<128xf32>
    %118 = vector.shape_cast %117 : vector<128xf32> to vector<1x128xf32>
    %119 = tpu.concatenate %115, %118 in 0 : vector<1x128xf32>, vector<1x128xf32> -> vector<2x128xf32>
    %cst_44 = arith.constant dense<0.000000e+00> : vector<2x128xf32>
    %120 = tpu.matmul %119, %58, %cst_44 {dimension_numbers = #tpu.dot_dimension_numbers<[1], [0], [0], [1], [0, 0, 1, 1], [], []>} : vector<2x128xf32>, vector<128x128xf32>, vector<2x128xf32> -> vector<2x128xf32>
    %cst_45 = arith.constant 0.001953125 : f32
    %121 = vector.broadcast %cst_45 : f32 to vector<2x128xf32>
    %122 = arith.mulf %120, %121 : vector<2x128xf32>
    %123 = vector.extract_strided_slice %122 {offsets = [0, 0], sizes = [1, 128], strides = [1, 1]} : vector<2x128xf32> to vector<1x128xf32>
    %124 = vector.extract_strided_slice %122 {offsets = [1, 0], sizes = [1, 128], strides = [1, 1]} : vector<2x128xf32> to vector<1x128xf32>
    %125 = arith.mulf %123, %123 : vector<1x128xf32>
    %126 = arith.subf %124, %125 : vector<1x128xf32>
    %cst_46 = arith.constant 9.99999974E-6 : f32
    %127 = vector.broadcast %cst_46 : f32 to vector<1x128xf32>
    %128 = arith.addf %126, %127 : vector<1x128xf32>
    %129 = math.rsqrt %128 : vector<1x128xf32>
    %130 = arith.mulf %112, %129 : vector<1x128xf32>
    %131 = arith.mulf %123, %130 : vector<1x128xf32>
    %132 = arith.subf %113, %131 : vector<1x128xf32>
    %133 = vector.broadcast %130 : vector<1x128xf32> to vector<32x128xf32>
    %134 = arith.mulf %111, %133 : vector<32x128xf32>
    %135 = vector.broadcast %132 : vector<1x128xf32> to vector<32x128xf32>
    %136 = arith.addf %134, %135 : vector<32x128xf32>
    %137 = arith.addf %0, %136 : vector<32x128xf32>
    %c0_47 = arith.constant 0 : index
    %c0_48 = arith.constant 0 : index
    %138 = vector.load %arg7[%c0_47, %c0_48] : memref<32x128xf32, #tpu.memory_space<vmem>>, vector<32x128xf32>
    tpu.vector_store %arg7[%c0_47, %c0_48], %137 {strides = array<i32>} : memref<32x128xf32, #tpu.memory_space<vmem>>, vector<32x128xf32>,
    return
  }
}

</mosaic_0001>

<llo_original>
// kernel: tpu_custom_call.1
$region0: #{tpu_custom_call.1}
  #allocation0 [shape = 'u32[]', space=smem, size = 0x4, offset = 0x4, fixed_abs, tag = 'smem constant byte address 0x4 - core index']
  #allocation1 [shape = 'u32[72,128]{1,0:T(1,128)}', space=vmem, size = 0x9000, scoped, tag = 'internal scratch']
  %s0 = inlined_call_operand.hbm [shape: f32[32,128], index: 0, kind: input, shape index: {}]
  %s1 = inlined_call_operand.hbm [shape: f32[384,128], index: 1, kind: input, shape index: {}]
  %s2 = inlined_call_operand.hbm [shape: f32[384,128], index: 2, kind: input, shape index: {}]
  %s3 = inlined_call_operand.vmem [shape: f32[1,128], index: 3, kind: input, shape index: {}]
  %s4 = inlined_call_operand.vmem [shape: f32[1,128], index: 4, kind: input, shape index: {}]
  %s5 = inlined_call_operand.vmem [shape: f32[1,128], index: 5, kind: input, shape index: {}]
  %s6 = inlined_call_operand.vmem [shape: f32[1,128], index: 6, kind: input, shape index: {}]
  %s7 = inlined_call_operand.hbm [shape: f32[32,128], index: 7, kind: output, shape index: {}]
  %s8 = sld [smem:[#allocation0]]
  $region50: #{tpu_custom_call.1} parent=0
    _
  %s10 = ssub.s32 1, %s8
  %s11 = scalar_select 0, %s10, %s8
  $region1: #{tpu_custom_call.1} parent=0
    #allocation2 [shape = 'u8[16384]{0}', space=vmem, size = 0x4000, scoped, tag = 'input window, operand 0, single buffered']
    #allocation3 [shape = 's32[1]{0}', space=sflag, size = 0x4, scoped, tag = 'scoped memory for tpu_custom_call.1']
    #allocation4 [shape = 's32[1]{0}', space=sflag, size = 0x4, scoped, tag = 'scoped memory for tpu_custom_call.1']
    #allocation5 [shape = 'u8[196608]{0}', space=vmem, size = 0x30000, scoped, tag = 'input window, operand 1, single buffered']
    #allocation6 [shape = 's32[1]{0}', space=sflag, size = 0x4, scoped, tag = 'scoped memory for tpu_custom_call.1']
    #allocation7 [shape = 'u8[196608]{0}', space=vmem, size = 0x30000, scoped, tag = 'input window, operand 2, single buffered']
    #allocation8 [shape = 'u8[16384]{0}', space=vmem, size = 0x4000, scoped, tag = 'output window, operand 0, single buffered']
    %12 = vsyncpa [#allocation3], 0
    %13 = vsyncpa [#allocation6], 0
    %14 = vsyncpa [#allocation4], 0
    // Predicated region
    $region2: #{tpu_custom_call.1} parent=1 // pred_check
      _
    $region3: #{tpu_custom_call.1} parent=1 // pred_check_branch
      %16 = sbr.rel (0) target = $region5
    $region4: #{tpu_custom_call.1} parent=1 // pred_region
      %18 = vsyncadd [#allocation3], 0
      %s19 = sshll.u32 %s0, 4
      %s20 = int_to_ptr.hbm [resolvable:$true] %s19
      %s21 = sshll.u32 [#allocation2], 4
      %s22 = int_to_ptr.vmem [resolvable:$true] %s21
      %27 = dma.hbm_to_vmem [thread:$0]  %s20, 512, %s22, [#allocation3], 128, 128, 8
    $region5: #{tpu_custom_call.1} parent=1 // pred_fallthru
      _
    // Predicated region
    $region6: #{tpu_custom_call.1} parent=1 // pred_check
      _
    $region7: #{tpu_custom_call.1} parent=1 // pred_check_branch
      %29 = sbr.rel (0) target = $region9
    $region8: #{tpu_custom_call.1} parent=1 // pred_region
      %31 = vsyncadd [#allocation6], 0
      %s32 = sshll.u32 %s1, 4
      %s33 = int_to_ptr.hbm [resolvable:$true] %s32
      %s34 = sshll.u32 [#allocation5], 4
      %s35 = int_to_ptr.vmem [resolvable:$true] %s34
      %40 = dma.hbm_to_vmem [thread:$0]  %s33, 6144, %s35, [#allocation6], 128, 128, 8
    $region9: #{tpu_custom_call.1} parent=1 // pred_fallthru
      _
    // Predicated region
    $region10: #{tpu_custom_call.1} parent=1 // pred_check
      _
    $region11: #{tpu_custom_call.1} parent=1 // pred_check_branch
      %42 = sbr.rel (0) target = $region13
    $region12: #{tpu_custom_call.1} parent=1 // pred_region
      %44 = vsyncadd [#allocation6], 0
      %s45 = sshll.u32 %s2, 4
      %s46 = int_to_ptr.hbm [resolvable:$true] %s45
      %s47 = sshll.u32 [#allocation7], 4
      %s48 = int_to_ptr.vmem [resolvable:$true] %s47
      %53 = dma.hbm_to_vmem [thread:$0]  %s46, 6144, %s48, [#allocation6], 128, 128, 8
    $region13: #{tpu_custom_call.1} parent=1 // pred_fallthru
      _
    // Predicated region
    $region14: #{tpu_custom_call.1} parent=1 // pred_check
      _
    $region15: #{tpu_custom_call.1} parent=1 // pred_check_branch
      %55 = sbr.rel (0) target = $region17
    $region16: #{tpu_custom_call.1} parent=1 // pred_region
      _
    $region17: #{tpu_custom_call.1} parent=1 // pred_fallthru
      _
    // Predicated region
    $region18: #{tpu_custom_call.1} parent=1 // pred_check
      _
    $region19: #{tpu_custom_call.1} parent=1 // pred_check_branch
      %57 = sbr.rel (0) target = $region21
    $region20: #{tpu_custom_call.1} parent=1 // pred_region
      _
    $region21: #{tpu_custom_call.1} parent=1 // pred_fallthru
      _
    // Predicated region
    $region22: #{tpu_custom_call.1} parent=1 // pred_check
      _
    $region23: #{tpu_custom_call.1} parent=1 // pred_check_branch
      %59 = sbr.rel (0) target = $region25
    $region24: #{tpu_custom_call.1} parent=1 // pred_region
      _
    $region25: #{tpu_custom_call.1} parent=1 // pred_fallthru
      _
    // Predicated region
    $region26: #{tpu_custom_call.1} parent=1 // pred_check
      _
    $region27: #{tpu_custom_call.1} parent=1 // pred_check_branch
      %61 = sbr.rel (0) target = $region29
    $region28: #{tpu_custom_call.1} parent=1 // pred_region
      _
    $region29: #{tpu_custom_call.1} parent=1 // pred_fallthru
      _
    // Predicated region
    $region30: #{tpu_custom_call.1} parent=1 // pred_check
      _
    $region31: #{tpu_custom_call.1} parent=1 // pred_check_branch
      %63 = sbr.rel (0) target = $region33
    $region32: #{tpu_custom_call.1} parent=1 // pred_region
      %65 = dma.done [#allocation3], 512
    $region33: #{tpu_custom_call.1} parent=1 // pred_fallthru
      _
    // Predicated region
    $region34: #{tpu_custom_call.1} parent=1 // pred_check
      _
    $region35: #{tpu_custom_call.1} parent=1 // pred_check_branch
      %67 = sbr.rel (0) target = $region37
    $region36: #{tpu_custom_call.1} parent=1 // pred_region
      %69 = dma.done [#allocation6], 6144
    $region37: #{tpu_custom_call.1} parent=1 // pred_fallthru
      _
    // Predicated region
    $region38: #{tpu_custom_call.1} parent=1 // pred_check
      _
    $region39: #{tpu_custom_call.1} parent=1 // pred_check_branch
      %71 = sbr.rel (0) target = $region41
    $region40: #{tpu_custom_call.1} parent=1 // pred_region
      %73 = dma.done [#allocation6], 6144
    $region41: #{tpu_custom_call.1} parent=1 // pred_fallthru
      _
    %v74 = vld [vmem:[#allocation2] sm:$0xff]
    %v75 = vld [vmem:[#allocation2 + $0x8] sm:$0xff]
    %v76 = vld [vmem:[#allocation2 + $0x10] sm:$0xff]
    %v77 = vld [vmem:[#allocation2 + $0x18] sm:$0xff]
    %v78 = vlaneseq
    %v79 = vshrl.u32 %v78, 7
    %v80 = vadd.s32 %v79, 8
    %v81 = vadd.s32 %v79, 16
    %v82 = vadd.s32 %v79, 24
    %vm83 = vcmp.lt.s32.totalorder %v79, 0
    %v84 = vsub.s32 0, %v79
    %v85 = vsel %vm83, %v84, %v79
    %v86 = vshrl.u32 %v85, 4
    %v87 = vand.u32 %v85, 15
    %v88 = vsub.s32 0, %v87
    %v89 = vsel %vm83, %v88, %v87
    %vm90 = vcmp.lt.s32.totalorder %v80, 0
    %v91 = vsub.s32 0, %v80
    %v92 = vsel %vm90, %v91, %v80
    %v93 = vshrl.u32 %v92, 4
    %v94 = vand.u32 %v92, 15
    %v95 = vsub.s32 0, %v94
    %v96 = vsel %vm90, %v95, %v94
    %vm97 = vcmp.lt.s32.totalorder %v81, 0
    %v98 = vsub.s32 0, %v81
    %v99 = vsel %vm97, %v98, %v81
    %v100 = vshrl.u32 %v99, 4
    %v101 = vand.u32 %v99, 15
    %v102 = vsub.s32 0, %v101
    %v103 = vsel %vm97, %v102, %v101
    %vm104 = vcmp.lt.s32.totalorder %v82, 0
    %v105 = vsub.s32 0, %v82
    %v106 = vsel %vm104, %v105, %v82
    %v107 = vshrl.u32 %v106, 4
    %v108 = vand.u32 %v106, 15
    %v109 = vsub.s32 0, %v108
    %v110 = vsel %vm104, %v109, %v108
    %vm111 = vcmp.ne.s32.totalorder %v89, 0
    %vm112 = vcmp.ne.s32.totalorder %v96, 0
    %vm113 = vcmp.ne.s32.totalorder %v103, 0
    %vm114 = vcmp.ne.s32.totalorder %v110, 0
    %vm115 = vcmp.lt.s32.totalorder %v89, 0
    %vm116 = vcmp.lt.s32.totalorder %v96, 0
    %vm117 = vcmp.lt.s32.totalorder %v103, 0
    %vm118 = vcmp.lt.s32.totalorder %v110, 0
    %vm119 = vmand %vm115, %vm111
    %vm120 = vmand %vm116, %vm112
    %vm121 = vmand %vm117, %vm113
    %vm122 = vmand %vm118, %vm114
    %v123 = vadd.s32 %v89, 16
    %v124 = vadd.s32 %v96, 16
    %v125 = vadd.s32 %v103, 16
    %v126 = vadd.s32 %v110, 16
    %v127 = vsel %vm119, %v123, %v89
    %v128 = vsel %vm120, %v124, %v96
    %v129 = vsel %vm121, %v125, %v103
    %v130 = vsel %vm122, %v126, %v110
    %vm131 = vcmp.ne.s32.totalorder %v127, 0
    %vm132 = vcmp.ne.s32.totalorder %v128, 0
    %vm133 = vcmp.ne.s32.totalorder %v129, 0
    %vm134 = vcmp.ne.s32.totalorder %v130, 0
    %vm135 = vcmp.ne.s32.totalorder %v127, 15
    %vm136 = vcmp.ne.s32.totalorder %v128, 15
    %vm137 = vcmp.ne.s32.totalorder %v129, 15
    %vm138 = vcmp.ne.s32.totalorder %v130, 15
    %v139 = vadd.s32 %v79, 32
    %v140 = vadd.s32 %v79, 40
    %v141 = vadd.s32 %v79, 48
    %v142 = vadd.s32 %v79, 56
    %v143 = vadd.s32 %v79, 64
    %v144 = vadd.s32 %v79, 72
    %v145 = vadd.s32 %v79, 80
    %v146 = vadd.s32 %v79, 88
    %v147 = vadd.s32 %v79, 96
    %v148 = vadd.s32 %v79, 104
    %v149 = vadd.s32 %v79, 112
    %v150 = vadd.s32 %v79, 120
    %v151 = vlaneseq
    %v152 = vand.u32 %v151, 127
    %vm153 = vcmp.lt.s32.totalorder %v79, 0
    %v154 = vsub.s32 0, %v79
    %v155 = vsel %vm153, %v154, %v79
    %v156 = vshrl.u32 %v155, 3
    %v157 = vand.u32 %v155, 7
    %v158 = vsub.s32 0, %v157
    %v159 = vsel %vm153, %v158, %v157
    %vm160 = vcmp.lt.s32.totalorder %v80, 0
    %v161 = vsub.s32 0, %v80
    %v162 = vsel %vm160, %v161, %v80
    %v163 = vshrl.u32 %v162, 3
    %v164 = vand.u32 %v162, 7
    %v165 = vsub.s32 0, %v164
    %v166 = vsel %vm160, %v165, %v164
    %vm167 = vcmp.lt.s32.totalorder %v81, 0
    %v168 = vsub.s32 0, %v81
    %v169 = vsel %vm167, %v168, %v81
    %v170 = vshrl.u32 %v169, 3
    %v171 = vand.u32 %v169, 7
    %v172 = vsub.s32 0, %v171
    %v173 = vsel %vm167, %v172, %v171
    %vm174 = vcmp.lt.s32.totalorder %v82, 0
    %v175 = vsub.s32 0, %v82
    %v176 = vsel %vm174, %v175, %v82
    %v177 = vshrl.u32 %v176, 3
    %v178 = vand.u32 %v176, 7
    %v179 = vsub.s32 0, %v178
    %v180 = vsel %vm174, %v179, %v178
    %vm181 = vcmp.lt.s32.totalorder %v139, 0
    %v182 = vsub.s32 0, %v139
    %v183 = vsel %vm181, %v182, %v139
    %v184 = vshrl.u32 %v183, 3
    %v185 = vand.u32 %v183, 7
    %v186 = vsub.s32 0, %v185
    %v187 = vsel %vm181, %v186, %v185
    %vm188 = vcmp.lt.s32.totalorder %v140, 0
    %v189 = vsub.s32 0, %v140
    %v190 = vsel %vm188, %v189, %v140
    %v191 = vshrl.u32 %v190, 3
    %v192 = vand.u32 %v190, 7
    %v193 = vsub.s32 0, %v192
    %v194 = vsel %vm188, %v193, %v192
    %vm195 = vcmp.lt.s32.totalorder %v141, 0
    %v196 = vsub.s32 0, %v141
    %v197 = vsel %vm195, %v196, %v141
    %v198 = vshrl.u32 %v197, 3
    %v199 = vand.u32 %v197, 7
    %v200 = vsub.s32 0, %v199
    %v201 = vsel %vm195, %v200, %v199
    %vm202 = vcmp.lt.s32.totalorder %v142, 0
    %v203 = vsub.s32 0, %v142
    %v204 = vsel %vm202, %v203, %v142
    %v205 = vshrl.u32 %v204, 3
    %v206 = vand.u32 %v204, 7
    %v207 = vsub.s32 0, %v206
    %v208 = vsel %vm202, %v207, %v206
    %vm209 = vcmp.lt.s32.totalorder %v143, 0
    %v210 = vsub.s32 0, %v143
    %v211 = vsel %vm209, %v210, %v143
    %v212 = vshrl.u32 %v211, 3
    %v213 = vand.u32 %v211, 7
    %v214 = vsub.s32 0, %v213
    %v215 = vsel %vm209, %v214, %v213
    %vm216 = vcmp.lt.s32.totalorder %v144, 0
    %v217 = vsub.s32 0, %v144
    %v218 = vsel %vm216, %v217, %v144
    %v219 = vshrl.u32 %v218, 3
    %v220 = vand.u32 %v218, 7
    %v221 = vsub.s32 0, %v220
    %v222 = vsel %vm216, %v221, %v220
    %vm223 = vcmp.lt.s32.totalorder %v145, 0
    %v224 = vsub.s32 0, %v145
    %v225 = vsel %vm223, %v224, %v145
    %v226 = vshrl.u32 %v225, 3
    %v227 = vand.u32 %v225, 7
    %v228 = vsub.s32 0, %v227
    %v229 = vsel %vm223, %v228, %v227
    %vm230 = vcmp.lt.s32.totalorder %v146, 0
    %v231 = vsub.s32 0, %v146
    %v232 = vsel %vm230, %v231, %v146
    %v233 = vshrl.u32 %v232, 3
    %v234 = vand.u32 %v232, 7
    %v235 = vsub.s32 0, %v234
    %v236 = vsel %vm230, %v235, %v234
    %vm237 = vcmp.lt.s32.totalorder %v147, 0
    %v238 = vsub.s32 0, %v147
    %v239 = vsel %vm237, %v238, %v147
    %v240 = vshrl.u32 %v239, 3
    %v241 = vand.u32 %v239, 7
    %v242 = vsub.s32 0, %v241
    %v243 = vsel %vm237, %v242, %v241
    %vm244 = vcmp.lt.s32.totalorder %v148, 0
    %v245 = vsub.s32 0, %v148
    %v246 = vsel %vm244, %v245, %v148
    %v247 = vshrl.u32 %v246, 3
    %v248 = vand.u32 %v246, 7
    %v249 = vsub.s32 0, %v248
    %v250 = vsel %vm244, %v249, %v248
    %vm251 = vcmp.lt.s32.totalorder %v149, 0
    %v252 = vsub.s32 0, %v149
    %v253 = vsel %vm251, %v252, %v149
    %v254 = vshrl.u32 %v253, 3
    %v255 = vand.u32 %v253, 7
    %v256 = vsub.s32 0, %v255
    %v257 = vsel %vm251, %v256, %v255
    %vm258 = vcmp.lt.s32.totalorder %v150, 0
    %v259 = vsub.s32 0, %v150
    %v260 = vsel %vm258, %v259, %v150
    %v261 = vshrl.u32 %v260, 3
    %v262 = vand.u32 %v260, 7
    %v263 = vsub.s32 0, %v262
    %v264 = vsel %vm258, %v263, %v262
    %vm265 = vcmp.ne.s32.totalorder %v159, 0
    %vm266 = vcmp.ne.s32.totalorder %v166, 0
    %vm267 = vcmp.ne.s32.totalorder %v173, 0
    %vm268 = vcmp.ne.s32.totalorder %v180, 0
    %vm269 = vcmp.ne.s32.totalorder %v187, 0
    %vm270 = vcmp.ne.s32.totalorder %v194, 0
    %vm271 = vcmp.ne.s32.totalorder %v201, 0
    %vm272 = vcmp.ne.s32.totalorder %v208, 0
    %vm273 = vcmp.ne.s32.totalorder %v215, 0
    %vm274 = vcmp.ne.s32.totalorder %v222, 0
    %vm275 = vcmp.ne.s32.totalorder %v229, 0
    %vm276 = vcmp.ne.s32.totalorder %v236, 0
    %vm277 = vcmp.ne.s32.totalorder %v243, 0
    %vm278 = vcmp.ne.s32.totalorder %v250, 0
    %vm279 = vcmp.ne.s32.totalorder %v257, 0
    %vm280 = vcmp.ne.s32.totalorder %v264, 0
    %vm281 = vcmp.lt.s32.totalorder %v159, 0
    %vm282 = vcmp.lt.s32.totalorder %v166, 0
    %vm283 = vcmp.lt.s32.totalorder %v173, 0
    %vm284 = vcmp.lt.s32.totalorder %v180, 0
    %vm285 = vcmp.lt.s32.totalorder %v187, 0
    %vm286 = vcmp.lt.s32.totalorder %v194, 0
    %vm287 = vcmp.lt.s32.totalorder %v201, 0
    %vm288 = vcmp.lt.s32.totalorder %v208, 0
    %vm289 = vcmp.lt.s32.totalorder %v215, 0
    %vm290 = vcmp.lt.s32.totalorder %v222, 0
    %vm291 = vcmp.lt.s32.totalorder %v229, 0
    %vm292 = vcmp.lt.s32.totalorder %v236, 0
    %vm293 = vcmp.lt.s32.totalorder %v243, 0
    %vm294 = vcmp.lt.s32.totalorder %v250, 0
    %vm295 = vcmp.lt.s32.totalorder %v257, 0
    %vm296 = vcmp.lt.s32.totalorder %v264, 0
    %vm297 = vmand %vm281, %vm265
    %vm298 = vmand %vm282, %vm266
    %vm299 = vmand %vm283, %vm267
    %vm300 = vmand %vm284, %vm268
    %vm301 = vmand %vm285, %vm269
    %vm302 = vmand %vm286, %vm270
    %vm303 = vmand %vm287, %vm271
    %vm304 = vmand %vm288, %vm272
    %vm305 = vmand %vm289, %vm273
    %vm306 = vmand %vm290, %vm274
    %vm307 = vmand %vm291, %vm275
    %vm308 = vmand %vm292, %vm276
    %vm309 = vmand %vm293, %vm277
    %vm310 = vmand %vm294, %vm278
    %vm311 = vmand %vm295, %vm279
    %vm312 = vmand %vm296, %vm280
    %v313 = vadd.s32 %v159, 8
    %v314 = vadd.s32 %v166, 8
    %v315 = vadd.s32 %v173, 8
    %v316 = vadd.s32 %v180, 8
    %v317 = vadd.s32 %v187, 8
    %v318 = vadd.s32 %v194, 8
    %v319 = vadd.s32 %v201, 8
    %v320 = vadd.s32 %v208, 8
    %v321 = vadd.s32 %v215, 8
    %v322 = vadd.s32 %v222, 8
    %v323 = vadd.s32 %v229, 8
    %v324 = vadd.s32 %v236, 8
    %v325 = vadd.s32 %v243, 8
    %v326 = vadd.s32 %v250, 8
    %v327 = vadd.s32 %v257, 8
    %v328 = vadd.s32 %v264, 8
    %v329 = vsel %vm297, %v313, %v159
    %v330 = vsel %vm298, %v314, %v166
    %v331 = vsel %vm299, %v315, %v173
    %v332 = vsel %vm300, %v316, %v180
    %v333 = vsel %vm301, %v317, %v187
    %v334 = vsel %vm302, %v318, %v194
    %v335 = vsel %vm303, %v319, %v201
    %v336 = vsel %vm304, %v320, %v208
    %v337 = vsel %vm305, %v321, %v215
    %v338 = vsel %vm306, %v322, %v222
    %v339 = vsel %vm307, %v323, %v229
    %v340 = vsel %vm308, %v324, %v236
    %v341 = vsel %vm309, %v325, %v243
    %v342 = vsel %vm310, %v326, %v250
    %v343 = vsel %vm311, %v327, %v257
    %v344 = vsel %vm312, %v328, %v264
    %vm345 = vcmp.lt.s32.totalorder %v152, 0
    %v346 = vsub.s32 0, %v152
    %v347 = vsel %vm345, %v346, %v152
    %v348 = vshrl.u32 %v347, 3
    %v349 = vand.u32 %v347, 7
    %v350 = vsub.s32 0, %v349
    %v351 = vsel %vm345, %v350, %v349
    %vm352 = vcmp.ne.s32.totalorder %v351, 0
    %vm353 = vcmp.lt.s32.totalorder %v351, 0
    %vm354 = vmand %vm353, %vm352
    %v355 = vadd.s32 %v351, 8
    %v356 = vsel %vm354, %v355, %v351
    %vm357 = vcmp.eq.s32.totalorder %v329, %v356
    %vm358 = vcmp.eq.s32.totalorder %v330, %v356
    %vm359 = vcmp.eq.s32.totalorder %v331, %v356
    %vm360 = vcmp.eq.s32.totalorder %v332, %v356
    %vm361 = vcmp.eq.s32.totalorder %v333, %v356
    %vm362 = vcmp.eq.s32.totalorder %v334, %v356
    %vm363 = vcmp.eq.s32.totalorder %v335, %v356
    %vm364 = vcmp.eq.s32.totalorder %v336, %v356
    %vm365 = vcmp.eq.s32.totalorder %v337, %v356
    %vm366 = vcmp.eq.s32.totalorder %v338, %v356
    %vm367 = vcmp.eq.s32.totalorder %v339, %v356
    %vm368 = vcmp.eq.s32.totalorder %v340, %v356
    %vm369 = vcmp.eq.s32.totalorder %v341, %v356
    %vm370 = vcmp.eq.s32.totalorder %v342, %v356
    %vm371 = vcmp.eq.s32.totalorder %v343, %v356
    %vm372 = vcmp.eq.s32.totalorder %v344, %v356
    %v373 = vsel %vm357, 1, 0
    %v374 = vsel %vm358, 1, 0
    %v375 = vsel %vm359, 1, 0
    %v376 = vsel %vm360, 1, 0
    %v377 = vsel %vm361, 1, 0
    %v378 = vsel %vm362, 1, 0
    %v379 = vsel %vm363, 1, 0
    %v380 = vsel %vm364, 1, 0
    %v381 = vsel %vm365, 1, 0
    %v382 = vsel %vm366, 1, 0
    %v383 = vsel %vm367, 1, 0
    %v384 = vsel %vm368, 1, 0
    %v385 = vsel %vm369, 1, 0
    %v386 = vsel %vm370, 1, 0
    %v387 = vsel %vm371, 1, 0
    %v388 = vsel %vm372, 1, 0
    %v389 = vcvt.s32.f32 %v373
    %v390 = vcvt.s32.f32 %v374
    %v391 = vcvt.s32.f32 %v375
    %v392 = vcvt.s32.f32 %v376
    %v393 = vcvt.s32.f32 %v377
    %v394 = vcvt.s32.f32 %v378
    %v395 = vcvt.s32.f32 %v379
    %v396 = vcvt.s32.f32 %v380
    %v397 = vcvt.s32.f32 %v381
    %v398 = vcvt.s32.f32 %v382
    %v399 = vcvt.s32.f32 %v383
    %v400 = vcvt.s32.f32 %v384
    %v401 = vcvt.s32.f32 %v385
    %v402 = vcvt.s32.f32 %v386
    %v403 = vcvt.s32.f32 %v387
    %v404 = vcvt.s32.f32 %v388
    %v405 = vrot.slane %v74, 7
    %v406 = vrot.slane %v75, 7
    %v407 = vrot.slane %v76, 7
    %v408 = vrot.slane %v77, 7
    %vm409 = vcmp.lt.s32.totalorder %v79, 1
    %v410 = vsel %vm409, %v407, %v408
    %v411 = vsel %vm409, %v406, %v407
    %v412 = vsel %vm409, %v405, %v406
    %v413 = vsel %vm409, %v408, %v405
    %v414 = vsel %vm131, 1, 0
    %v415 = vsel %vm132, 1, 0
    %v416 = vsel %vm133, 1, 0
    %v417 = vsel %vm134, 1, 0
    %vm418 = vcmp.eq.s32.totalorder %v414, 1
    %vm419 = vcmp.eq.s32.totalorder %v415, 1
    %vm420 = vcmp.eq.s32.totalorder %v416, 1
    %vm421 = vcmp.eq.s32.totalorder %v417, 1
    %v422 = vsel %vm418, %v413, 0.0
    %v423 = vsel %vm419, %v412, 0.0
    %v424 = vsel %vm420, %v411, 0.0
    %v425 = vsel %vm421, %v410, 0.0
    %v426 = vrot.slane %v74, 1
    %v427 = vrot.slane %v75, 1
    %v428 = vrot.slane %v76, 1
    %v429 = vrot.slane %v77, 1
    %vm430 = vcmp.lt.s32.totalorder %v79, 7
    %v431 = vsel %vm430, %v428, %v429
    %v432 = vsel %vm430, %v427, %v428
    %v433 = vsel %vm430, %v426, %v427
    %v434 = vsel %vm430, %v429, %v426
    %v435 = vsel %vm135, 1, 0
    %v436 = vsel %vm136, 1, 0
    %v437 = vsel %vm137, 1, 0
    %v438 = vsel %vm138, 1, 0
    %vm439 = vcmp.eq.s32.totalorder %v435, 1
    %vm440 = vcmp.eq.s32.totalorder %v436, 1
    %vm441 = vcmp.eq.s32.totalorder %v437, 1
    %vm442 = vcmp.eq.s32.totalorder %v438, 1
    %v443 = vsel %vm439, %v433, 0.0
    %v444 = vsel %vm440, %v432, 0.0
    %v445 = vsel %vm441, %v431, 0.0
    %v446 = vsel %vm442, %v434, 0.0
    %v447 = vld [vmem:[#allocation5] sm:$0xff]
    %v448 = vld [vmem:[#allocation5 + $0x8] sm:$0xff]
    %v449 = vld [vmem:[#allocation5 + $0x10] sm:$0xff]
    %v450 = vld [vmem:[#allocation5 + $0x18] sm:$0xff]
    %v451 = vld [vmem:[#allocation5 + $0x20] sm:$0xff]
    %v452 = vld [vmem:[#allocation5 + $0x28] sm:$0xff]
    %v453 = vld [vmem:[#allocation5 + $0x30] sm:$0xff]
    %v454 = vld [vmem:[#allocation5 + $0x38] sm:$0xff]
    %v455 = vld [vmem:[#allocation5 + $0x40] sm:$0xff]
    %v456 = vld [vmem:[#allocation5 + $0x48] sm:$0xff]
    %v457 = vld [vmem:[#allocation5 + $0x50] sm:$0xff]
    %v458 = vld [vmem:[#allocation5 + $0x58] sm:$0xff]
    %v459 = vld [vmem:[#allocation5 + $0x60] sm:$0xff]
    %v460 = vld [vmem:[#allocation5 + $0x68] sm:$0xff]
    %v461 = vld [vmem:[#allocation5 + $0x70] sm:$0xff]
    %v462 = vld [vmem:[#allocation5 + $0x78] sm:$0xff]
    %v463 = vld [vmem:[#allocation5 + $0x80] sm:$0xff]
    %v464 = vld [vmem:[#allocation5 + $0x88] sm:$0xff]
    %v465 = vld [vmem:[#allocation5 + $0x90] sm:$0xff]
    %v466 = vld [vmem:[#allocation5 + $0x98] sm:$0xff]
    %v467 = vld [vmem:[#allocation5 + $0xa0] sm:$0xff]
    %v468 = vld [vmem:[#allocation5 + $0xa8] sm:$0xff]
    %v469 = vld [vmem:[#allocation5 + $0xb0] sm:$0xff]
    %v470 = vld [vmem:[#allocation5 + $0xb8] sm:$0xff]
    %v471 = vld [vmem:[#allocation5 + $0xc0] sm:$0xff]
    %v472 = vld [vmem:[#allocation5 + $0xc8] sm:$0xff]
    %v473 = vld [vmem:[#allocation5 + $0xd0] sm:$0xff]
    %v474 = vld [vmem:[#allocation5 + $0xd8] sm:$0xff]
    %v475 = vld [vmem:[#allocation5 + $0xe0] sm:$0xff]
    %v476 = vld [vmem:[#allocation5 + $0xe8] sm:$0xff]
    %v477 = vld [vmem:[#allocation5 + $0xf0] sm:$0xff]
    %v478 = vld [vmem:[#allocation5 + $0xf8] sm:$0xff]
    %v479 = vld [vmem:[#allocation5 + $0x100] sm:$0xff]
    %v480 = vld [vmem:[#allocation5 + $0x108] sm:$0xff]
    %v481 = vld [vmem:[#allocation5 + $0x110] sm:$0xff]
    %v482 = vld [vmem:[#allocation5 + $0x118] sm:$0xff]
    %v483 = vld [vmem:[#allocation5 + $0x120] sm:$0xff]
    %v484 = vld [vmem:[#allocation5 + $0x128] sm:$0xff]
    %v485 = vld [vmem:[#allocation5 + $0x130] sm:$0xff]
    %v486 = vld [vmem:[#allocation5 + $0x138] sm:$0xff]
    %v487 = vld [vmem:[#allocation5 + $0x140] sm:$0xff]
    %v488 = vld [vmem:[#allocation5 + $0x148] sm:$0xff]
    %v489 = vld [vmem:[#allocation5 + $0x150] sm:$0xff]
    %v490 = vld [vmem:[#allocation5 + $0x158] sm:$0xff]
    %v491 = vld [vmem:[#allocation5 + $0x160] sm:$0xff]
    %v492 = vld [vmem:[#allocation5 + $0x168] sm:$0xff]
    %v493 = vld [vmem:[#allocation5 + $0x170] sm:$0xff]
    %v494 = vld [vmem:[#allocation5 + $0x178] sm:$0xff]
    %495 = vmatpush.msra.mxu0 %v462
    %496 = vmatpush.msra.mxu0 %v461
    %497 = vmatpush.msra.mxu0 %v460
    %498 = vmatpush.msra.mxu0 %v459
    %499 = vmatpush.msra.mxu0 %v458
    %500 = vmatpush.msra.mxu0 %v457
    %501 = vmatpush.msra.mxu0 %v456
    %502 = vmatpush.msra.mxu0 %v455
    %503 = vmatpush.msra.mxu0 %v454
    %504 = vmatpush.msra.mxu0 %v453
    %505 = vmatpush.msra.mxu0 %v452
    %506 = vmatpush.msra.mxu0 %v451
    %507 = vmatpush.msra.mxu0 %v450
    %508 = vmatpush.msra.mxu0 %v449
    %509 = vmatpush.msra.mxu0 %v448
    %510 = vmatpush.msra.mxu0 %v447
    %511 = vmatmul.f32.gmra.mxu0 %v422
    %v512 = vpop.f32.mrf.mxu0
    %v513 = vadd.f32 0.0, %v512
    %514 = vmatmul.f32.gmra.mxu0 %v423
    %v515 = vpop.f32.mrf.mxu0
    %v516 = vadd.f32 0.0, %v515
    %517 = vmatmul.f32.gmra.mxu0 %v424
    %v518 = vpop.f32.mrf.mxu0
    %v519 = vadd.f32 0.0, %v518
    %520 = vmatmul.f32.gmra.mxu0 %v425
    %v521 = vpop.f32.mrf.mxu0
    %v522 = vadd.f32 0.0, %v521
    %523 = vdwg.mxu0
    %524 = vmatpush.msra.mxu0 %v478
    %525 = vmatpush.msra.mxu0 %v477
    %526 = vmatpush.msra.mxu0 %v476
    %527 = vmatpush.msra.mxu0 %v475
    %528 = vmatpush.msra.mxu0 %v474
    %529 = vmatpush.msra.mxu0 %v473
    %530 = vmatpush.msra.mxu0 %v472
    %531 = vmatpush.msra.mxu0 %v471
    %532 = vmatpush.msra.mxu0 %v470
    %533 = vmatpush.msra.mxu0 %v469
    %534 = vmatpush.msra.mxu0 %v468
    %535 = vmatpush.msra.mxu0 %v467
    %536 = vmatpush.msra.mxu0 %v466
    %537 = vmatpush.msra.mxu0 %v465
    %538 = vmatpush.msra.mxu0 %v464
    %539 = vmatpush.msra.mxu0 %v463
    %540 = vmatmul.f32.gmra.mxu0 %v74
    %v541 = vpop.f32.mrf.mxu0
    %v542 = vadd.f32 %v513, %v541
    %543 = vmatmul.f32.gmra.mxu0 %v75
    %v544 = vpop.f32.mrf.mxu0
    %v545 = vadd.f32 %v516, %v544
    %546 = vmatmul.f32.gmra.mxu0 %v76
    %v547 = vpop.f32.mrf.mxu0
    %v548 = vadd.f32 %v519, %v547
    %549 = vmatmul.f32.gmra.mxu0 %v77
    %v550 = vpop.f32.mrf.mxu0
    %v551 = vadd.f32 %v522, %v550
    %552 = vdwg.mxu0
    %553 = vmatpush.msra.mxu0 %v494
    %554 = vmatpush.msra.mxu0 %v493
    %555 = vmatpush.msra.mxu0 %v492
    %556 = vmatpush.msra.mxu0 %v491
    %557 = vmatpush.msra.mxu0 %v490
    %558 = vmatpush.msra.mxu0 %v489
    %559 = vmatpush.msra.mxu0 %v488
    %560 = vmatpush.msra.mxu0 %v487
    %561 = vmatpush.msra.mxu0 %v486
    %562 = vmatpush.msra.mxu0 %v485
    %563 = vmatpush.msra.mxu0 %v484
    %564 = vmatpush.msra.mxu0 %v483
    %565 = vmatpush.msra.mxu0 %v482
    %566 = vmatpush.msra.mxu0 %v481
    %567 = vmatpush.msra.mxu0 %v480
    %568 = vmatpush.msra.mxu0 %v479
    %569 = vmatmul.f32.gmra.mxu0 %v443
    %v570 = vpop.f32.mrf.mxu0
    %v571 = vadd.f32 %v542, %v570
    %572 = vmatmul.f32.gmra.mxu0 %v444
    %v573 = vpop.f32.mrf.mxu0
    %v574 = vadd.f32 %v545, %v573
    %575 = vmatmul.f32.gmra.mxu0 %v445
    %v576 = vpop.f32.mrf.mxu0
    %v577 = vadd.f32 %v548, %v576
    %578 = vmatmul.f32.gmra.mxu0 %v446
    %v579 = vpop.f32.mrf.mxu0
    %v580 = vadd.f32 %v551, %v579
    %581 = vdwg.mxu0
    %v582 = vld [vmem:[%s3] sm:$0x1]
    %v583 = vld [vmem:[%s4] sm:$0x1]
    %v584 = vadd.f32 %v571, %v574
    %v585 = vadd.f32 %v584, %v577
    %v586 = vadd.f32 %v585, %v580
    %v587 = vrot.slane %v586, 4
    %v588 = vadd.f32 %v586, %v587
    %v589 = vrot.slane %v588, 2
    %v590 = vadd.f32 %v588, %v589
    %v591 = vrot.slane %v590, 1
    %v592 = vadd.f32 %v590, %v591
    %v593 = vmul.f32 %v571, %v571
    %v594 = vmul.f32 %v574, %v574
    %v595 = vmul.f32 %v577, %v577
    %v596 = vmul.f32 %v580, %v580
    %v597 = vadd.f32 %v593, %v594
    %v598 = vadd.f32 %v597, %v595
    %v599 = vadd.f32 %v598, %v596
    %v600 = vrot.slane %v599, 4
    %v601 = vadd.f32 %v599, %v600
    %v602 = vrot.slane %v601, 2
    %v603 = vadd.f32 %v601, %v602
    %v604 = vrot.slane %v603, 1
    %v605 = vadd.f32 %v603, %v604
    %vm606 = vcmask 1040384
    %v607 = vsel %vm606, %v592, %v605
    %608 = vmatpush.msra.mxu0 %v404
    %609 = vmatpush.msra.mxu0 %v403
    %610 = vmatpush.msra.mxu0 %v402
    %611 = vmatpush.msra.mxu0 %v401
    %612 = vmatpush.msra.mxu0 %v400
    %613 = vmatpush.msra.mxu0 %v399
    %614 = vmatpush.msra.mxu0 %v398
    %615 = vmatpush.msra.mxu0 %v397
    %616 = vmatpush.msra.mxu0 %v396
    %617 = vmatpush.msra.mxu0 %v395
    %618 = vmatpush.msra.mxu0 %v394
    %619 = vmatpush.msra.mxu0 %v393
    %620 = vmatpush.msra.mxu0 %v392
    %621 = vmatpush.msra.mxu0 %v391
    %622 = vmatpush.msra.mxu0 %v390
    %623 = vmatpush.msra.mxu0 %v389
    %624 = vmatmul.f32.gmra.mxu0 %v607
    %v625 = vpop.f32.mrf.mxu0
    %v626 = vadd.f32 0.0, %v625
    %627 = vdwg.mxu0
    %v628 = vmul.f32 %v626, 0.001953125
    %v629 = vmul.f32 %v628, %v628
    %v631 = vrot.slane %v629, 7
    %v633 = vsub.f32 %v628, %v631
    %v634 = vadd.f32 %v633, 1e-05
    %v635 = vrsqrt.pop %v634
    %v636 = vmul.f32 %v635, %v634
    %v637 = vmul.f32 %v636, %v635
    %v638 = vmul.f32 0.5, %v637
    %v639 = vsub.f32 1.5, %v638
    %v640 = vmul.f32 %v635, %v639
    %vm641 = vweird.f32 %v634
    %vm642 = vweird.f32 %v635
    %vm643 = vmor %vm641, %vm642
    %v644 = vsel %vm643, %v635, %v640
    %646 = vst [vmem:[#allocation1] sm:$0xff] %v644
    %s647 = scalar_lea.vmem [#allocation1], 1
    %v648 = vld [vmem:[%s647] ss:$9 sm:$0xff]
    %v650 = vmul.f32 %v582, %v648
    %v651 = vmul.f32 %v628, %v650
    %v652 = vsub.f32 %v583, %v651
    %v654 = vperm.slane %v650, 0
    %v656 = vmul.f32 %v571, %v654
    %v657 = vmul.f32 %v574, %v654
    %v658 = vmul.f32 %v577, %v654
    %v659 = vmul.f32 %v580, %v654
    %v661 = vperm.slane %v652, 0
    %v663 = vadd.f32 %v656, %v661
    %v664 = vadd.f32 %v657, %v661
    %v665 = vadd.f32 %v658, %v661
    %v666 = vadd.f32 %v659, %v661
    %v667 = vmax.f32 %v663, 0.0
    %v668 = vmax.f32 %v664, 0.0
    %v669 = vmax.f32 %v665, 0.0
    %v670 = vmax.f32 %v666, 0.0
    %v671 = vrot.slane %v667, 7
    %v672 = vrot.slane %v668, 7
    %v673 = vrot.slane %v669, 7
    %v674 = vrot.slane %v670, 7
    %v675 = vsel %vm409, %v673, %v674
    %v676 = vsel %vm409, %v672, %v673
    %v677 = vsel %vm409, %v671, %v672
    %v678 = vsel %vm409, %v674, %v671
    %v679 = vsel %vm418, %v678, 0.0
    %v680 = vsel %vm419, %v677, 0.0
    %v681 = vsel %vm420, %v676, 0.0
    %v682 = vsel %vm421, %v675, 0.0
    %v683 = vrot.slane %v667, 1
    %v684 = vrot.slane %v668, 1
    %v685 = vrot.slane %v669, 1
    %v686 = vrot.slane %v670, 1
    %v687 = vsel %vm430, %v685, %v686
    %v688 = vsel %vm430, %v684, %v685
    %v689 = vsel %vm430, %v683, %v684
    %v690 = vsel %vm430, %v686, %v683
    %v691 = vsel %vm439, %v689, 0.0
    %v692 = vsel %vm440, %v688, 0.0
    %v693 = vsel %vm441, %v687, 0.0
    %v694 = vsel %vm442, %v690, 0.0
    %v695 = vld [vmem:[#allocation7] sm:$0xff]
    %v696 = vld [vmem:[#allocation7 + $0x8] sm:$0xff]
    %v697 = vld [vmem:[#allocation7 + $0x10] sm:$0xff]
    %v698 = vld [vmem:[#allocation7 + $0x18] sm:$0xff]
    %v699 = vld [vmem:[#allocation7 + $0x20] sm:$0xff]
    %v700 = vld [vmem:[#allocation7 + $0x28] sm:$0xff]
    %v701 = vld [vmem:[#allocation7 + $0x30] sm:$0xff]
    %v702 = vld [vmem:[#allocation7 + $0x38] sm:$0xff]
    %v703 = vld [vmem:[#allocation7 + $0x40] sm:$0xff]
    %v704 = vld [vmem:[#allocation7 + $0x48] sm:$0xff]
    %v705 = vld [vmem:[#allocation7 + $0x50] sm:$0xff]
    %v706 = vld [vmem:[#allocation7 + $0x58] sm:$0xff]
    %v707 = vld [vmem:[#allocation7 + $0x60] sm:$0xff]
    %v708 = vld [vmem:[#allocation7 + $0x68] sm:$0xff]
    %v709 = vld [vmem:[#allocation7 + $0x70] sm:$0xff]
    %v710 = vld [vmem:[#allocation7 + $0x78] sm:$0xff]
    %v711 = vld [vmem:[#allocation7 + $0x80] sm:$0xff]
    %v712 = vld [vmem:[#allocation7 + $0x88] sm:$0xff]
    %v713 = vld [vmem:[#allocation7 + $0x90] sm:$0xff]
    %v714 = vld [vmem:[#allocation7 + $0x98] sm:$0xff]
    %v715 = vld [vmem:[#allocation7 + $0xa0] sm:$0xff]
    %v716 = vld [vmem:[#allocation7 + $0xa8] sm:$0xff]
    %v717 = vld [vmem:[#allocation7 + $0xb0] sm:$0xff]
    %v718 = vld [vmem:[#allocation7 + $0xb8] sm:$0xff]
    %v719 = vld [vmem:[#allocation7 + $0xc0] sm:$0xff]
    %v720 = vld [vmem:[#allocation7 + $0xc8] sm:$0xff]
    %v721 = vld [vmem:[#allocation7 + $0xd0] sm:$0xff]
    %v722 = vld [vmem:[#allocation7 + $0xd8] sm:$0xff]
    %v723 = vld [vmem:[#allocation7 + $0xe0] sm:$0xff]
    %v724 = vld [vmem:[#allocation7 + $0xe8] sm:$0xff]
    %v725 = vld [vmem:[#allocation7 + $0xf0] sm:$0xff]
    %v726 = vld [vmem:[#allocation7 + $0xf8] sm:$0xff]
    %v727 = vld [vmem:[#allocation7 + $0x100] sm:$0xff]
    %v728 = vld [vmem:[#allocation7 + $0x108] sm:$0xff]
    %v729 = vld [vmem:[#allocation7 + $0x110] sm:$0xff]
    %v730 = vld [vmem:[#allocation7 + $0x118] sm:$0xff]
    %v731 = vld [vmem:[#allocation7 + $0x120] sm:$0xff]
    %v732 = vld [vmem:[#allocation7 + $0x128] sm:$0xff]
    %v733 = vld [vmem:[#allocation7 + $0x130] sm:$0xff]
    %v734 = vld [vmem:[#allocation7 + $0x138] sm:$0xff]
    %v735 = vld [vmem:[#allocation7 + $0x140] sm:$0xff]
    %v736 = vld [vmem:[#allocation7 + $0x148] sm:$0xff]
    %v737 = vld [vmem:[#allocation7 + $0x150] sm:$0xff]
    %v738 = vld [vmem:[#allocation7 + $0x158] sm:$0xff]
    %v739 = vld [vmem:[#allocation7 + $0x160] sm:$0xff]
    %v740 = vld [vmem:[#allocation7 + $0x168] sm:$0xff]
    %v741 = vld [vmem:[#allocation7 + $0x170] sm:$0xff]
    %v742 = vld [vmem:[#allocation7 + $0x178] sm:$0xff]
    %743 = vmatpush.msra.mxu0 %v710
    %744 = vmatpush.msra.mxu0 %v709
    %745 = vmatpush.msra.mxu0 %v708
    %746 = vmatpush.msra.mxu0 %v707
    %747 = vmatpush.msra.mxu0 %v706
    %748 = vmatpush.msra.mxu0 %v705
    %749 = vmatpush.msra.mxu0 %v704
    %750 = vmatpush.msra.mxu0 %v703
    %751 = vmatpush.msra.mxu0 %v702
    %752 = vmatpush.msra.mxu0 %v701
    %753 = vmatpush.msra.mxu0 %v700
    %754 = vmatpush.msra.mxu0 %v699
    %755 = vmatpush.msra.mxu0 %v698
    %756 = vmatpush.msra.mxu0 %v697
    %757 = vmatpush.msra.mxu0 %v696
    %758 = vmatpush.msra.mxu0 %v695
    %759 = vmatmul.f32.gmra.mxu0 %v679
    %v760 = vpop.f32.mrf.mxu0
    %v761 = vadd.f32 0.0, %v760
    %762 = vmatmul.f32.gmra.mxu0 %v680
    %v763 = vpop.f32.mrf.mxu0
    %v764 = vadd.f32 0.0, %v763
    %765 = vmatmul.f32.gmra.mxu0 %v681
    %v766 = vpop.f32.mrf.mxu0
    %v767 = vadd.f32 0.0, %v766
    %768 = vmatmul.f32.gmra.mxu0 %v682
    %v769 = vpop.f32.mrf.mxu0
    %v770 = vadd.f32 0.0, %v769
    %771 = vdwg.mxu0
    %772 = vmatpush.msra.mxu0 %v726
    %773 = vmatpush.msra.mxu0 %v725
    %774 = vmatpush.msra.mxu0 %v724
    %775 = vmatpush.msra.mxu0 %v723
    %776 = vmatpush.msra.mxu0 %v722
    %777 = vmatpush.msra.mxu0 %v721
    %778 = vmatpush.msra.mxu0 %v720
    %779 = vmatpush.msra.mxu0 %v719
    %780 = vmatpush.msra.mxu0 %v718
    %781 = vmatpush.msra.mxu0 %v717
    %782 = vmatpush.msra.mxu0 %v716
    %783 = vmatpush.msra.mxu0 %v715
    %784 = vmatpush.msra.mxu0 %v714
    %785 = vmatpush.msra.mxu0 %v713
    %786 = vmatpush.msra.mxu0 %v712
    %787 = vmatpush.msra.mxu0 %v711
    %788 = vmatmul.f32.gmra.mxu0 %v667
    %v789 = vpop.f32.mrf.mxu0
    %v790 = vadd.f32 %v761, %v789
    %791 = vmatmul.f32.gmra.mxu0 %v668
    %v792 = vpop.f32.mrf.mxu0
    %v793 = vadd.f32 %v764, %v792
    %794 = vmatmul.f32.gmra.mxu0 %v669
    %v795 = vpop.f32.mrf.mxu0
    %v796 = vadd.f32 %v767, %v795
    %797 = vmatmul.f32.gmra.mxu0 %v670
    %v798 = vpop.f32.mrf.mxu0
    %v799 = vadd.f32 %v770, %v798
    %800 = vdwg.mxu0
    %801 = vmatpush.msra.mxu0 %v742
    %802 = vmatpush.msra.mxu0 %v741
    %803 = vmatpush.msra.mxu0 %v740
    %804 = vmatpush.msra.mxu0 %v739
    %805 = vmatpush.msra.mxu0 %v738
    %806 = vmatpush.msra.mxu0 %v737
    %807 = vmatpush.msra.mxu0 %v736
    %808 = vmatpush.msra.mxu0 %v735
    %809 = vmatpush.msra.mxu0 %v734
    %810 = vmatpush.msra.mxu0 %v733
    %811 = vmatpush.msra.mxu0 %v732
    %812 = vmatpush.msra.mxu0 %v731
    %813 = vmatpush.msra.mxu0 %v730
    %814 = vmatpush.msra.mxu0 %v729
    %815 = vmatpush.msra.mxu0 %v728
    %816 = vmatpush.msra.mxu0 %v727
    %817 = vmatmul.f32.gmra.mxu0 %v691
    %v818 = vpop.f32.mrf.mxu0
    %v819 = vadd.f32 %v790, %v818
    %820 = vmatmul.f32.gmra.mxu0 %v692
    %v821 = vpop.f32.mrf.mxu0
    %v822 = vadd.f32 %v793, %v821
    %823 = vmatmul.f32.gmra.mxu0 %v693
    %v824 = vpop.f32.mrf.mxu0
    %v825 = vadd.f32 %v796, %v824
    %826 = vmatmul.f32.gmra.mxu0 %v694
    %v827 = vpop.f32.mrf.mxu0
    %v828 = vadd.f32 %v799, %v827
    %829 = vdwg.mxu0
    %v830 = vld [vmem:[%s5] sm:$0x1]
    %v831 = vld [vmem:[%s6] sm:$0x1]
    %v832 = vadd.f32 %v819, %v822
    %v833 = vadd.f32 %v832, %v825
    %v834 = vadd.f32 %v833, %v828
    %v835 = vrot.slane %v834, 4
    %v836 = vadd.f32 %v834, %v835
    %v837 = vrot.slane %v836, 2
    %v838 = vadd.f32 %v836, %v837
    %v839 = vrot.slane %v838, 1
    %v840 = vadd.f32 %v838, %v839
    %v841 = vmul.f32 %v819, %v819
    %v842 = vmul.f32 %v822, %v822
    %v843 = vmul.f32 %v825, %v825
    %v844 = vmul.f32 %v828, %v828
    %v845 = vadd.f32 %v841, %v842
    %v846 = vadd.f32 %v845, %v843
    %v847 = vadd.f32 %v846, %v844
    %v848 = vrot.slane %v847, 4
    %v849 = vadd.f32 %v847, %v848
    %v850 = vrot.slane %v849, 2
    %v851 = vadd.f32 %v849, %v850
    %v852 = vrot.slane %v851, 1
    %v853 = vadd.f32 %v851, %v852
    %v854 = vsel %vm606, %v840, %v853
    %855 = vmatpush.msra.mxu0 %v404
    %856 = vmatpush.msra.mxu0 %v403
    %857 = vmatpush.msra.mxu0 %v402
    %858 = vmatpush.msra.mxu0 %v401
    %859 = vmatpush.msra.mxu0 %v400
    %860 = vmatpush.msra.mxu0 %v399
    %861 = vmatpush.msra.mxu0 %v398
    %862 = vmatpush.msra.mxu0 %v397
    %863 = vmatpush.msra.mxu0 %v396
    %864 = vmatpush.msra.mxu0 %v395
    %865 = vmatpush.msra.mxu0 %v394
    %866 = vmatpush.msra.mxu0 %v393
    %867 = vmatpush.msra.mxu0 %v392
    %868 = vmatpush.msra.mxu0 %v391
    %869 = vmatpush.msra.mxu0 %v390
    %870 = vmatpush.msra.mxu0 %v389
    %871 = vmatmul.f32.gmra.mxu0 %v854
    %v872 = vpop.f32.mrf.mxu0
    %v873 = vadd.f32 0.0, %v872
    %874 = vdwg.mxu0
    %v875 = vmul.f32 %v873, 0.001953125
    %v876 = vmul.f32 %v875, %v875
    %v878 = vrot.slane %v876, 7
    %v880 = vsub.f32 %v875, %v878
    %v881 = vadd.f32 %v880, 1e-05
    %v882 = vrsqrt.pop %v881
    %v883 = vmul.f32 %v882, %v881
    %v884 = vmul.f32 %v883, %v882
    %v885 = vmul.f32 0.5, %v884
    %v886 = vsub.f32 1.5, %v885
    %v887 = vmul.f32 %v882, %v886
    %vm888 = vweird.f32 %v881
    %vm889 = vweird.f32 %v882
    %vm890 = vmor %vm888, %vm889
    %v891 = vsel %vm890, %v882, %v887
    %893 = vst [vmem:[#allocation1] sm:$0xff] %v891
    %s894 = scalar_lea.vmem [#allocation1], 1
    %v895 = vld [vmem:[%s894] ss:$9 sm:$0xff]
    %v897 = vmul.f32 %v830, %v895
    %v898 = vmul.f32 %v875, %v897
    %v899 = vsub.f32 %v831, %v898
    %v901 = vperm.slane %v897, 0
    %v903 = vmul.f32 %v819, %v901
    %v904 = vmul.f32 %v822, %v901
    %v905 = vmul.f32 %v825, %v901
    %v906 = vmul.f32 %v828, %v901
    %v908 = vperm.slane %v899, 0
    %v910 = vadd.f32 %v903, %v908
    %v911 = vadd.f32 %v904, %v908
    %v912 = vadd.f32 %v905, %v908
    %v913 = vadd.f32 %v906, %v908
    %v914 = vadd.f32 %v74, %v910
    %v915 = vadd.f32 %v75, %v911
    %v916 = vadd.f32 %v76, %v912
    %v917 = vadd.f32 %v77, %v913
    %918 = vst [vmem:[#allocation8] sm:$0xff] %v914
    %919 = vst [vmem:[#allocation8 + $0x8] sm:$0xff] %v915
    %920 = vst [vmem:[#allocation8 + $0x10] sm:$0xff] %v916
    %921 = vst [vmem:[#allocation8 + $0x18] sm:$0xff] %v917
    // Predicated region
    $region42: #{tpu_custom_call.1} parent=1 // pred_check
      _
    $region43: #{tpu_custom_call.1} parent=1 // pred_check_branch
      %923 = sbr.rel (0) target = $region45
    $region44: #{tpu_custom_call.1} parent=1 // pred_region
      %925 = vsyncadd [#allocation4], 0
      %s926 = sshll.u32 [#allocation8], 4
      %s927 = int_to_ptr.vmem [resolvable:$true] %s926
      %s928 = sshll.u32 %s7, 4
      %s929 = int_to_ptr.hbm [resolvable:$true] %s928
      %934 = dma.vmem_to_hbm [thread:$0]  %s927, 512, %s929, [#allocation4], 128, 128, 8
    $region45: #{tpu_custom_call.1} parent=1 // pred_fallthru
      _
    // Predicated region
    $region46: #{tpu_custom_call.1} parent=1 // pred_check
      _
    $region47: #{tpu_custom_call.1} parent=1 // pred_check_branch
      %936 = sbr.rel (0) target = $region49
    $region48: #{tpu_custom_call.1} parent=1 // pred_region
      %938 = dma.done [#allocation4], 512
    $region49: #{tpu_custom_call.1} parent=1 // pred_fallthru
      _
    %939 = vsyncpa [#allocation3], 1
    %940 = vsyncpa [#allocation6], 1
    %941 = vsyncpa [#allocation4], 1

</llo_original>
